<compile_context>
chip_gen: v6e
topology: v6e:2x2x1
jax: 0.10.0
libtpu: 0.0.40
codegen_flags: <defaults>
</compile_context>

<pallas_src>
import jax
import jax.numpy as jnp
from jax.experimental import pallas as pl
from jax.experimental.pallas import tpu as pltpu

# Synthetic environment constants (CartPole-like): obs dim 4, 2 actions.
N_STATES = 4
N_ACTIONS = 2
HIDDEN = 10

# Packed-parameter layout (PyTorch (out, in) order, row-major flattened).
_W1_OFF = 0
_B1_OFF = _W1_OFF + HIDDEN * N_STATES
_W2_OFF = _B1_OFF + HIDDEN
_B2_OFF = _W2_OFF + N_ACTIONS * HIDDEN
_PARAM_LEN = _B2_OFF + N_ACTIONS          # 72 floats total

_LANE_TILE = 512                          # batch tile (lanes) for big batches


def _net_kernel(params_ref, x_ref, out_ref):
    # params_ref: SMEM f32[_PARAM_LEN]  packed {W1, b1, W2, b2}
    # x_ref:      VMEM f32[N_STATES, TB]   (features on sublanes, batch on lanes)
    # out_ref:    VMEM f32[N_ACTIONS, TB]
    x = x_ref[...]                                       # (N_STATES, TB)

    # fc1 + ReLU: h[j,:] = relu(sum_k W1[j,k] * x[k,:] + b1[j])
    # Unrolled scalar-times-lane-dense-row FMAs -> pure VPU work.
    h_rows = []
    for j in range(HIDDEN):
        acc = params_ref[_W1_OFF + j * N_STATES] * x[0:1, :]
        for k in range(1, N_STATES):
            acc = acc + params_ref[_W1_OFF + j * N_STATES + k] * x[k:k + 1, :]
        acc = acc + params_ref[_B1_OFF + j]
        h_rows.append(jnp.maximum(acc, 0.0))             # (1, TB)

    # out layer: o[a,:] = sum_j W2[a,j] * h[j,:] + b2[a]
    o_rows = []
    for a in range(N_ACTIONS):
        acc = params_ref[_W2_OFF + a * HIDDEN] * h_rows[0]
        for j in range(1, HIDDEN):
            acc = acc + params_ref[_W2_OFF + a * HIDDEN + j] * h_rows[j]
        acc = acc + params_ref[_B2_OFF + a]
        o_rows.append(acc)                               # (1, TB)

    out_ref[...] = jnp.concatenate(o_rows, axis=0).astype(out_ref.dtype)


def _pack_params(w1, b1, w2, b2):
    return jnp.concatenate(
        [w1.reshape(-1), b1.reshape(-1), w2.reshape(-1), b2.reshape(-1)]
    ).astype(jnp.float32)


def net_forward(x, w1, b1, w2, b2):
    """fc1(N_STATES->10) -> ReLU -> out(10->N_ACTIONS). x: (B, N_STATES)."""
    B = x.shape[0]
    params = _pack_params(w1, b1, w2, b2)        # one packed SMEM buffer
    x_t = x.astype(jnp.float32).T                # (N_STATES, B): batch on lanes

    smem_spec = pl.BlockSpec(memory_space=pltpu.MemorySpace.SMEM)

    if B >= _LANE_TILE and B % _LANE_TILE == 0:
        # Replay-batch path: stream lane-dense batch tiles; "parallel" lets
        # Mosaic shard tiles across both TensorCores on v7x (neutral v5e/v6e).
        out_t = pl.pallas_call(
            _net_kernel,
            out_shape=jax.ShapeDtypeStruct((N_ACTIONS, B), jnp.float32),
            grid=(B // _LANE_TILE,),
            in_specs=[
                smem_spec,
                pl.BlockSpec((N_STATES, _LANE_TILE), lambda i: (0, i)),
            ],
            out_specs=pl.BlockSpec((N_ACTIONS, _LANE_TILE), lambda i: (0, i)),
            compiler_params=pltpu.CompilerParams(
                dimension_semantics=("parallel",)),
        )(params, x_t)
    else:
        # Per-environment-step path: gridless call, no size-1 grid scaffolding.
        out_t = pl.pallas_call(
            _net_kernel,
            out_shape=jax.ShapeDtypeStruct((N_ACTIONS, B), jnp.float32),
            in_specs=[
                smem_spec,
                pl.BlockSpec(memory_space=pltpu.MemorySpace.VMEM),
            ],
            out_specs=pl.BlockSpec(memory_space=pltpu.MemorySpace.VMEM),
        )(params, x_t)

    return out_t.T                               # (B, N_ACTIONS)


def init_params(key):
    k1, k2, k3, k4 = jax.random.split(key, 4)
    # Matches `weight.data.normal_(0, 0.1)` in the PyTorch module.
    w1 = 0.1 * jax.random.normal(k1, (HIDDEN, N_STATES), jnp.float32)
    w2 = 0.1 * jax.random.normal(k2, (N_ACTIONS, HIDDEN), jnp.float32)
    # PyTorch default bias init: U(-1/sqrt(fan_in), 1/sqrt(fan_in)).
    bound1 = 1.0 / jnp.sqrt(jnp.float32(N_STATES))
    bound2 = 1.0 / jnp.sqrt(jnp.float32(HIDDEN))
    b1 = jax.random.uniform(k3, (HIDDEN,), jnp.float32, -bound1, bound1)
    b2 = jax.random.uniform(k4, (N_ACTIONS,), jnp.float32, -bound2, bound2)
    return w1, b1, w2, b2


if __name__ == "__main__":
    key = jax.random.PRNGKey(0)
    kx, kp = jax.random.split(key)
    batch = 2
    x = jax.random.normal(kx, (batch, N_STATES), jnp.float32)
    w1, b1, w2, b2 = init_params(kp)

    actions_value = net_forward(x, w1, b1, w2, b2)
    jax.block_until_ready(actions_value)

    # Pure-JAX reference check (same math path as the PyTorch module).
    ref = jnp.maximum(x @ w1.T + b1, 0.0) @ w2.T + b2
    assert actions_value.shape == (batch, N_ACTIONS)
    assert jnp.allclose(actions_value, ref, atol=1e-5, rtol=1e-5)

    print("KERNEL_OK")
</pallas_src>

<mosaic_0001>
module attributes {stable_mosaic.version = 11 : i64} {
  func.func @_net_kernel(%arg0: memref<72xf32, #tpu.memory_space<smem>>, %arg1: memref<4x2xf32, #tpu.memory_space<vmem>>, %arg2: memref<2x2xf32, #tpu.memory_space<vmem>>) attributes {dimension_semantics = [], scalar_prefetch = 0 : i64, scratch_operands = 0 : i64, tpu.core_type = #tpu.core_type<tc>} {
    %c0 = arith.constant 0 : index
    %c0_0 = arith.constant 0 : index
    %0 = vector.load %arg1[%c0, %c0_0] : memref<4x2xf32, #tpu.memory_space<vmem>>, vector<4x2xf32>
    %c0_1 = arith.constant 0 : index
    %1 = memref.load %arg0[%c0_1] : memref<72xf32, #tpu.memory_space<smem>>
    %2 = vector.extract_strided_slice %0 {offsets = [0, 0], sizes = [1, 2], strides = [1, 1]} : vector<4x2xf32> to vector<1x2xf32>
    %3 = vector.broadcast %1 : f32 to vector<1x2xf32>
    %4 = arith.mulf %3, %2 : vector<1x2xf32>
    %c1 = arith.constant 1 : index
    %5 = memref.load %arg0[%c1] : memref<72xf32, #tpu.memory_space<smem>>
    %6 = vector.extract_strided_slice %0 {offsets = [1, 0], sizes = [1, 2], strides = [1, 1]} : vector<4x2xf32> to vector<1x2xf32>
    %7 = vector.broadcast %5 : f32 to vector<1x2xf32>
    %8 = arith.mulf %7, %6 : vector<1x2xf32>
    %9 = arith.addf %4, %8 : vector<1x2xf32>
    %c2 = arith.constant 2 : index
    %10 = memref.load %arg0[%c2] : memref<72xf32, #tpu.memory_space<smem>>
    %11 = vector.extract_strided_slice %0 {offsets = [2, 0], sizes = [1, 2], strides = [1, 1]} : vector<4x2xf32> to vector<1x2xf32>
    %12 = vector.broadcast %10 : f32 to vector<1x2xf32>
    %13 = arith.mulf %12, %11 : vector<1x2xf32>
    %14 = arith.addf %9, %13 : vector<1x2xf32>
    %c3 = arith.constant 3 : index
    %15 = memref.load %arg0[%c3] : memref<72xf32, #tpu.memory_space<smem>>
    %16 = vector.extract_strided_slice %0 {offsets = [3, 0], sizes = [1, 2], strides = [1, 1]} : vector<4x2xf32> to vector<1x2xf32>
    %17 = vector.broadcast %15 : f32 to vector<1x2xf32>
    %18 = arith.mulf %17, %16 : vector<1x2xf32>
    %19 = arith.addf %14, %18 : vector<1x2xf32>
    %c40 = arith.constant 40 : index
    %20 = memref.load %arg0[%c40] : memref<72xf32, #tpu.memory_space<smem>>
    %21 = vector.broadcast %20 : f32 to vector<1x2xf32>
    %22 = arith.addf %19, %21 : vector<1x2xf32>
    %cst = arith.constant 0.000000e+00 : f32
    %23 = vector.broadcast %cst : f32 to vector<1x2xf32>
    %24 = arith.maximumf %22, %23 : vector<1x2xf32>
    %c4 = arith.constant 4 : index
    %25 = memref.load %arg0[%c4] : memref<72xf32, #tpu.memory_space<smem>>
    %26 = vector.extract_strided_slice %0 {offsets = [0, 0], sizes = [1, 2], strides = [1, 1]} : vector<4x2xf32> to vector<1x2xf32>
    %27 = vector.broadcast %25 : f32 to vector<1x2xf32>
    %28 = arith.mulf %27, %26 : vector<1x2xf32>
    %c5 = arith.constant 5 : index
    %29 = memref.load %arg0[%c5] : memref<72xf32, #tpu.memory_space<smem>>
    %30 = vector.extract_strided_slice %0 {offsets = [1, 0], sizes = [1, 2], strides = [1, 1]} : vector<4x2xf32> to vector<1x2xf32>
    %31 = vector.broadcast %29 : f32 to vector<1x2xf32>
    %32 = arith.mulf %31, %30 : vector<1x2xf32>
    %33 = arith.addf %28, %32 : vector<1x2xf32>
    %c6 = arith.constant 6 : index
    %34 = memref.load %arg0[%c6] : memref<72xf32, #tpu.memory_space<smem>>
    %35 = vector.extract_strided_slice %0 {offsets = [2, 0], sizes = [1, 2], strides = [1, 1]} : vector<4x2xf32> to vector<1x2xf32>
    %36 = vector.broadcast %34 : f32 to vector<1x2xf32>
    %37 = arith.mulf %36, %35 : vector<1x2xf32>
    %38 = arith.addf %33, %37 : vector<1x2xf32>
    %c7 = arith.constant 7 : index
    %39 = memref.load %arg0[%c7] : memref<72xf32, #tpu.memory_space<smem>>
    %40 = vector.extract_strided_slice %0 {offsets = [3, 0], sizes = [1, 2], strides = [1, 1]} : vector<4x2xf32> to vector<1x2xf32>
    %41 = vector.broadcast %39 : f32 to vector<1x2xf32>
    %42 = arith.mulf %41, %40 : vector<1x2xf32>
    %43 = arith.addf %38, %42 : vector<1x2xf32>
    %c41 = arith.constant 41 : index
    %44 = memref.load %arg0[%c41] : memref<72xf32, #tpu.memory_space<smem>>
    %45 = vector.broadcast %44 : f32 to vector<1x2xf32>
    %46 = arith.addf %43, %45 : vector<1x2xf32>
    %cst_2 = arith.constant 0.000000e+00 : f32
    %47 = vector.broadcast %cst_2 : f32 to vector<1x2xf32>
    %48 = arith.maximumf %46, %47 : vector<1x2xf32>
    %c8 = arith.constant 8 : index
    %49 = memref.load %arg0[%c8] : memref<72xf32, #tpu.memory_space<smem>>
    %50 = vector.extract_strided_slice %0 {offsets = [0, 0], sizes = [1, 2], strides = [1, 1]} : vector<4x2xf32> to vector<1x2xf32>
    %51 = vector.broadcast %49 : f32 to vector<1x2xf32>
    %52 = arith.mulf %51, %50 : vector<1x2xf32>
    %c9 = arith.constant 9 : index
    %53 = memref.load %arg0[%c9] : memref<72xf32, #tpu.memory_space<smem>>
    %54 = vector.extract_strided_slice %0 {offsets = [1, 0], sizes = [1, 2], strides = [1, 1]} : vector<4x2xf32> to vector<1x2xf32>
    %55 = vector.broadcast %53 : f32 to vector<1x2xf32>
    %56 = arith.mulf %55, %54 : vector<1x2xf32>
    %57 = arith.addf %52, %56 : vector<1x2xf32>
    %c10 = arith.constant 10 : index
    %58 = memref.load %arg0[%c10] : memref<72xf32, #tpu.memory_space<smem>>
    %59 = vector.extract_strided_slice %0 {offsets = [2, 0], sizes = [1, 2], strides = [1, 1]} : vector<4x2xf32> to vector<1x2xf32>
    %60 = vector.broadcast %58 : f32 to vector<1x2xf32>
    %61 = arith.mulf %60, %59 : vector<1x2xf32>
    %62 = arith.addf %57, %61 : vector<1x2xf32>
    %c11 = arith.constant 11 : index
    %63 = memref.load %arg0[%c11] : memref<72xf32, #tpu.memory_space<smem>>
    %64 = vector.extract_strided_slice %0 {offsets = [3, 0], sizes = [1, 2], strides = [1, 1]} : vector<4x2xf32> to vector<1x2xf32>
    %65 = vector.broadcast %63 : f32 to vector<1x2xf32>
    %66 = arith.mulf %65, %64 : vector<1x2xf32>
    %67 = arith.addf %62, %66 : vector<1x2xf32>
    %c42 = arith.constant 42 : index
    %68 = memref.load %arg0[%c42] : memref<72xf32, #tpu.memory_space<smem>>
    %69 = vector.broadcast %68 : f32 to vector<1x2xf32>
    %70 = arith.addf %67, %69 : vector<1x2xf32>
    %cst_3 = arith.constant 0.000000e+00 : f32
    %71 = vector.broadcast %cst_3 : f32 to vector<1x2xf32>
    %72 = arith.maximumf %70, %71 : vector<1x2xf32>
    %c12 = arith.constant 12 : index
    %73 = memref.load %arg0[%c12] : memref<72xf32, #tpu.memory_space<smem>>
    %74 = vector.extract_strided_slice %0 {offsets = [0, 0], sizes = [1, 2], strides = [1, 1]} : vector<4x2xf32> to vector<1x2xf32>
    %75 = vector.broadcast %73 : f32 to vector<1x2xf32>
    %76 = arith.mulf %75, %74 : vector<1x2xf32>
    %c13 = arith.constant 13 : index
    %77 = memref.load %arg0[%c13] : memref<72xf32, #tpu.memory_space<smem>>
    %78 = vector.extract_strided_slice %0 {offsets = [1, 0], sizes = [1, 2], strides = [1, 1]} : vector<4x2xf32> to vector<1x2xf32>
    %79 = vector.broadcast %77 : f32 to vector<1x2xf32>
    %80 = arith.mulf %79, %78 : vector<1x2xf32>
    %81 = arith.addf %76, %80 : vector<1x2xf32>
    %c14 = arith.constant 14 : index
    %82 = memref.load %arg0[%c14] : memref<72xf32, #tpu.memory_space<smem>>
    %83 = vector.extract_strided_slice %0 {offsets = [2, 0], sizes = [1, 2], strides = [1, 1]} : vector<4x2xf32> to vector<1x2xf32>
    %84 = vector.broadcast %82 : f32 to vector<1x2xf32>
    %85 = arith.mulf %84, %83 : vector<1x2xf32>
    %86 = arith.addf %81, %85 : vector<1x2xf32>
    %c15 = arith.constant 15 : index
    %87 = memref.load %arg0[%c15] : memref<72xf32, #tpu.memory_space<smem>>
    %88 = vector.extract_strided_slice %0 {offsets = [3, 0], sizes = [1, 2], strides = [1, 1]} : vector<4x2xf32> to vector<1x2xf32>
    %89 = vector.broadcast %87 : f32 to vector<1x2xf32>
    %90 = arith.mulf %89, %88 : vector<1x2xf32>
    %91 = arith.addf %86, %90 : vector<1x2xf32>
    %c43 = arith.constant 43 : index
    %92 = memref.load %arg0[%c43] : memref<72xf32, #tpu.memory_space<smem>>
    %93 = vector.broadcast %92 : f32 to vector<1x2xf32>
    %94 = arith.addf %91, %93 : vector<1x2xf32>
    %cst_4 = arith.constant 0.000000e+00 : f32
    %95 = vector.broadcast %cst_4 : f32 to vector<1x2xf32>
    %96 = arith.maximumf %94, %95 : vector<1x2xf32>
    %c16 = arith.constant 16 : index
    %97 = memref.load %arg0[%c16] : memref<72xf32, #tpu.memory_space<smem>>
    %98 = vector.extract_strided_slice %0 {offsets = [0, 0], sizes = [1, 2], strides = [1, 1]} : vector<4x2xf32> to vector<1x2xf32>
    %99 = vector.broadcast %97 : f32 to vector<1x2xf32>
    %100 = arith.mulf %99, %98 : vector<1x2xf32>
    %c17 = arith.constant 17 : index
    %101 = memref.load %arg0[%c17] : memref<72xf32, #tpu.memory_space<smem>>
    %102 = vector.extract_strided_slice %0 {offsets = [1, 0], sizes = [1, 2], strides = [1, 1]} : vector<4x2xf32> to vector<1x2xf32>
    %103 = vector.broadcast %101 : f32 to vector<1x2xf32>
    %104 = arith.mulf %103, %102 : vector<1x2xf32>
    %105 = arith.addf %100, %104 : vector<1x2xf32>
    %c18 = arith.constant 18 : index
    %106 = memref.load %arg0[%c18] : memref<72xf32, #tpu.memory_space<smem>>
    %107 = vector.extract_strided_slice %0 {offsets = [2, 0], sizes = [1, 2], strides = [1, 1]} : vector<4x2xf32> to vector<1x2xf32>
    %108 = vector.broadcast %106 : f32 to vector<1x2xf32>
    %109 = arith.mulf %108, %107 : vector<1x2xf32>
    %110 = arith.addf %105, %109 : vector<1x2xf32>
    %c19 = arith.constant 19 : index
    %111 = memref.load %arg0[%c19] : memref<72xf32, #tpu.memory_space<smem>>
    %112 = vector.extract_strided_slice %0 {offsets = [3, 0], sizes = [1, 2], strides = [1, 1]} : vector<4x2xf32> to vector<1x2xf32>
    %113 = vector.broadcast %111 : f32 to vector<1x2xf32>
    %114 = arith.mulf %113, %112 : vector<1x2xf32>
    %115 = arith.addf %110, %114 : vector<1x2xf32>
    %c44 = arith.constant 44 : index
    %116 = memref.load %arg0[%c44] : memref<72xf32, #tpu.memory_space<smem>>
    %117 = vector.broadcast %116 : f32 to vector<1x2xf32>
    %118 = arith.addf %115, %117 : vector<1x2xf32>
    %cst_5 = arith.constant 0.000000e+00 : f32
    %119 = vector.broadcast %cst_5 : f32 to vector<1x2xf32>
    %120 = arith.maximumf %118, %119 : vector<1x2xf32>
    %c20 = arith.constant 20 : index
    %121 = memref.load %arg0[%c20] : memref<72xf32, #tpu.memory_space<smem>>
    %122 = vector.extract_strided_slice %0 {offsets = [0, 0], sizes = [1, 2], strides = [1, 1]} : vector<4x2xf32> to vector<1x2xf32>
    %123 = vector.broadcast %121 : f32 to vector<1x2xf32>
    %124 = arith.mulf %123, %122 : vector<1x2xf32>
    %c21 = arith.constant 21 : index
    %125 = memref.load %arg0[%c21] : memref<72xf32, #tpu.memory_space<smem>>
    %126 = vector.extract_strided_slice %0 {offsets = [1, 0], sizes = [1, 2], strides = [1, 1]} : vector<4x2xf32> to vector<1x2xf32>
    %127 = vector.broadcast %125 : f32 to vector<1x2xf32>
    %128 = arith.mulf %127, %126 : vector<1x2xf32>
    %129 = arith.addf %124, %128 : vector<1x2xf32>
    %c22 = arith.constant 22 : index
    %130 = memref.load %arg0[%c22] : memref<72xf32, #tpu.memory_space<smem>>
    %131 = vector.extract_strided_slice %0 {offsets = [2, 0], sizes = [1, 2], strides = [1, 1]} : vector<4x2xf32> to vector<1x2xf32>
    %132 = vector.broadcast %130 : f32 to vector<1x2xf32>
    %133 = arith.mulf %132, %131 : vector<1x2xf32>
    %134 = arith.addf %129, %133 : vector<1x2xf32>
    %c23 = arith.constant 23 : index
    %135 = memref.load %arg0[%c23] : memref<72xf32, #tpu.memory_space<smem>>
    %136 = vector.extract_strided_slice %0 {offsets = [3, 0], sizes = [1, 2], strides = [1, 1]} : vector<4x2xf32> to vector<1x2xf32>
    %137 = vector.broadcast %135 : f32 to vector<1x2xf32>
    %138 = arith.mulf %137, %136 : vector<1x2xf32>
    %139 = arith.addf %134, %138 : vector<1x2xf32>
    %c45 = arith.constant 45 : index
    %140 = memref.load %arg0[%c45] : memref<72xf32, #tpu.memory_space<smem>>
    %141 = vector.broadcast %140 : f32 to vector<1x2xf32>
    %142 = arith.addf %139, %141 : vector<1x2xf32>
    %cst_6 = arith.constant 0.000000e+00 : f32
    %143 = vector.broadcast %cst_6 : f32 to vector<1x2xf32>
    %144 = arith.maximumf %142, %143 : vector<1x2xf32>
    %c24 = arith.constant 24 : index
    %145 = memref.load %arg0[%c24] : memref<72xf32, #tpu.memory_space<smem>>
    %146 = vector.extract_strided_slice %0 {offsets = [0, 0], sizes = [1, 2], strides = [1, 1]} : vector<4x2xf32> to vector<1x2xf32>
    %147 = vector.broadcast %145 : f32 to vector<1x2xf32>
    %148 = arith.mulf %147, %146 : vector<1x2xf32>
    %c25 = arith.constant 25 : index
    %149 = memref.load %arg0[%c25] : memref<72xf32, #tpu.memory_space<smem>>
    %150 = vector.extract_strided_slice %0 {offsets = [1, 0], sizes = [1, 2], strides = [1, 1]} : vector<4x2xf32> to vector<1x2xf32>
    %151 = vector.broadcast %149 : f32 to vector<1x2xf32>
    %152 = arith.mulf %151, %150 : vector<1x2xf32>
    %153 = arith.addf %148, %152 : vector<1x2xf32>
    %c26 = arith.constant 26 : index
    %154 = memref.load %arg0[%c26] : memref<72xf32, #tpu.memory_space<smem>>
    %155 = vector.extract_strided_slice %0 {offsets = [2, 0], sizes = [1, 2], strides = [1, 1]} : vector<4x2xf32> to vector<1x2xf32>
    %156 = vector.broadcast %154 : f32 to vector<1x2xf32>
    %157 = arith.mulf %156, %155 : vector<1x2xf32>
    %158 = arith.addf %153, %157 : vector<1x2xf32>
    %c27 = arith.constant 27 : index
    %159 = memref.load %arg0[%c27] : memref<72xf32, #tpu.memory_space<smem>>
    %160 = vector.extract_strided_slice %0 {offsets = [3, 0], sizes = [1, 2], strides = [1, 1]} : vector<4x2xf32> to vector<1x2xf32>
    %161 = vector.broadcast %159 : f32 to vector<1x2xf32>
    %162 = arith.mulf %161, %160 : vector<1x2xf32>
    %163 = arith.addf %158, %162 : vector<1x2xf32>
    %c46 = arith.constant 46 : index
    %164 = memref.load %arg0[%c46] : memref<72xf32, #tpu.memory_space<smem>>
    %165 = vector.broadcast %164 : f32 to vector<1x2xf32>
    %166 = arith.addf %163, %165 : vector<1x2xf32>
    %cst_7 = arith.constant 0.000000e+00 : f32
    %167 = vector.broadcast %cst_7 : f32 to vector<1x2xf32>
    %168 = arith.maximumf %166, %167 : vector<1x2xf32>
    %c28 = arith.constant 28 : index
    %169 = memref.load %arg0[%c28] : memref<72xf32, #tpu.memory_space<smem>>
    %170 = vector.extract_strided_slice %0 {offsets = [0, 0], sizes = [1, 2], strides = [1, 1]} : vector<4x2xf32> to vector<1x2xf32>
    %171 = vector.broadcast %169 : f32 to vector<1x2xf32>
    %172 = arith.mulf %171, %170 : vector<1x2xf32>
    %c29 = arith.constant 29 : index
    %173 = memref.load %arg0[%c29] : memref<72xf32, #tpu.memory_space<smem>>
    %174 = vector.extract_strided_slice %0 {offsets = [1, 0], sizes = [1, 2], strides = [1, 1]} : vector<4x2xf32> to vector<1x2xf32>
    %175 = vector.broadcast %173 : f32 to vector<1x2xf32>
    %176 = arith.mulf %175, %174 : vector<1x2xf32>
    %177 = arith.addf %172, %176 : vector<1x2xf32>
    %c30 = arith.constant 30 : index
    %178 = memref.load %arg0[%c30] : memref<72xf32, #tpu.memory_space<smem>>
    %179 = vector.extract_strided_slice %0 {offsets = [2, 0], sizes = [1, 2], strides = [1, 1]} : vector<4x2xf32> to vector<1x2xf32>
    %180 = vector.broadcast %178 : f32 to vector<1x2xf32>
    %181 = arith.mulf %180, %179 : vector<1x2xf32>
    %182 = arith.addf %177, %181 : vector<1x2xf32>
    %c31 = arith.constant 31 : index
    %183 = memref.load %arg0[%c31] : memref<72xf32, #tpu.memory_space<smem>>
    %184 = vector.extract_strided_slice %0 {offsets = [3, 0], sizes = [1, 2], strides = [1, 1]} : vector<4x2xf32> to vector<1x2xf32>
    %185 = vector.broadcast %183 : f32 to vector<1x2xf32>
    %186 = arith.mulf %185, %184 : vector<1x2xf32>
    %187 = arith.addf %182, %186 : vector<1x2xf32>
    %c47 = arith.constant 47 : index
    %188 = memref.load %arg0[%c47] : memref<72xf32, #tpu.memory_space<smem>>
    %189 = vector.broadcast %188 : f32 to vector<1x2xf32>
    %190 = arith.addf %187, %189 : vector<1x2xf32>
    %cst_8 = arith.constant 0.000000e+00 : f32
    %191 = vector.broadcast %cst_8 : f32 to vector<1x2xf32>
    %192 = arith.maximumf %190, %191 : vector<1x2xf32>
    %c32 = arith.constant 32 : index
    %193 = memref.load %arg0[%c32] : memref<72xf32, #tpu.memory_space<smem>>
    %194 = vector.extract_strided_slice %0 {offsets = [0, 0], sizes = [1, 2], strides = [1, 1]} : vector<4x2xf32> to vector<1x2xf32>
    %195 = vector.broadcast %193 : f32 to vector<1x2xf32>
    %196 = arith.mulf %195, %194 : vector<1x2xf32>
    %c33 = arith.constant 33 : index
    %197 = memref.load %arg0[%c33] : memref<72xf32, #tpu.memory_space<smem>>
    %198 = vector.extract_strided_slice %0 {offsets = [1, 0], sizes = [1, 2], strides = [1, 1]} : vector<4x2xf32> to vector<1x2xf32>
    %199 = vector.broadcast %197 : f32 to vector<1x2xf32>
    %200 = arith.mulf %199, %198 : vector<1x2xf32>
    %201 = arith.addf %196, %200 : vector<1x2xf32>
    %c34 = arith.constant 34 : index
    %202 = memref.load %arg0[%c34] : memref<72xf32, #tpu.memory_space<smem>>
    %203 = vector.extract_strided_slice %0 {offsets = [2, 0], sizes = [1, 2], strides = [1, 1]} : vector<4x2xf32> to vector<1x2xf32>
    %204 = vector.broadcast %202 : f32 to vector<1x2xf32>
    %205 = arith.mulf %204, %203 : vector<1x2xf32>
    %206 = arith.addf %201, %205 : vector<1x2xf32>
    %c35 = arith.constant 35 : index
    %207 = memref.load %arg0[%c35] : memref<72xf32, #tpu.memory_space<smem>>
    %208 = vector.extract_strided_slice %0 {offsets = [3, 0], sizes = [1, 2], strides = [1, 1]} : vector<4x2xf32> to vector<1x2xf32>
    %209 = vector.broadcast %207 : f32 to vector<1x2xf32>
    %210 = arith.mulf %209, %208 : vector<1x2xf32>
    %211 = arith.addf %206, %210 : vector<1x2xf32>
    %c48 = arith.constant 48 : index
    %212 = memref.load %arg0[%c48] : memref<72xf32, #tpu.memory_space<smem>>
    %213 = vector.broadcast %212 : f32 to vector<1x2xf32>
    %214 = arith.addf %211, %213 : vector<1x2xf32>
    %cst_9 = arith.constant 0.000000e+00 : f32
    %215 = vector.broadcast %cst_9 : f32 to vector<1x2xf32>
    %216 = arith.maximumf %214, %215 : vector<1x2xf32>
    %c36 = arith.constant 36 : index
    %217 = memref.load %arg0[%c36] : memref<72xf32, #tpu.memory_space<smem>>
    %218 = vector.extract_strided_slice %0 {offsets = [0, 0], sizes = [1, 2], strides = [1, 1]} : vector<4x2xf32> to vector<1x2xf32>
    %219 = vector.broadcast %217 : f32 to vector<1x2xf32>
    %220 = arith.mulf %219, %218 : vector<1x2xf32>
    %c37 = arith.constant 37 : index
    %221 = memref.load %arg0[%c37] : memref<72xf32, #tpu.memory_space<smem>>
    %222 = vector.extract_strided_slice %0 {offsets = [1, 0], sizes = [1, 2], strides = [1, 1]} : vector<4x2xf32> to vector<1x2xf32>
    %223 = vector.broadcast %221 : f32 to vector<1x2xf32>
    %224 = arith.mulf %223, %222 : vector<1x2xf32>
    %225 = arith.addf %220, %224 : vector<1x2xf32>
    %c38 = arith.constant 38 : index
    %226 = memref.load %arg0[%c38] : memref<72xf32, #tpu.memory_space<smem>>
    %227 = vector.extract_strided_slice %0 {offsets = [2, 0], sizes = [1, 2], strides = [1, 1]} : vector<4x2xf32> to vector<1x2xf32>
    %228 = vector.broadcast %226 : f32 to vector<1x2xf32>
    %229 = arith.mulf %228, %227 : vector<1x2xf32>
    %230 = arith.addf %225, %229 : vector<1x2xf32>
    %c39 = arith.constant 39 : index
    %231 = memref.load %arg0[%c39] : memref<72xf32, #tpu.memory_space<smem>>
    %232 = vector.extract_strided_slice %0 {offsets = [3, 0], sizes = [1, 2], strides = [1, 1]} : vector<4x2xf32> to vector<1x2xf32>
    %233 = vector.broadcast %231 : f32 to vector<1x2xf32>
    %234 = arith.mulf %233, %232 : vector<1x2xf32>
    %235 = arith.addf %230, %234 : vector<1x2xf32>
    %c49 = arith.constant 49 : index
    %236 = memref.load %arg0[%c49] : memref<72xf32, #tpu.memory_space<smem>>
    %237 = vector.broadcast %236 : f32 to vector<1x2xf32>
    %238 = arith.addf %235, %237 : vector<1x2xf32>
    %cst_10 = arith.constant 0.000000e+00 : f32
    %239 = vector.broadcast %cst_10 : f32 to vector<1x2xf32>
    %240 = arith.maximumf %238, %239 : vector<1x2xf32>
    %c50 = arith.constant 50 : index
    %241 = memref.load %arg0[%c50] : memref<72xf32, #tpu.memory_space<smem>>
    %242 = vector.broadcast %241 : f32 to vector<1x2xf32>
    %243 = arith.mulf %242, %24 : vector<1x2xf32>
    %c51 = arith.constant 51 : index
    %244 = memref.load %arg0[%c51] : memref<72xf32, #tpu.memory_space<smem>>
    %245 = vector.broadcast %244 : f32 to vector<1x2xf32>
    %246 = arith.mulf %245, %48 : vector<1x2xf32>
    %247 = arith.addf %243, %246 : vector<1x2xf32>
    %c52 = arith.constant 52 : index
    %248 = memref.load %arg0[%c52] : memref<72xf32, #tpu.memory_space<smem>>
    %249 = vector.broadcast %248 : f32 to vector<1x2xf32>
    %250 = arith.mulf %249, %72 : vector<1x2xf32>
    %251 = arith.addf %247, %250 : vector<1x2xf32>
    %c53 = arith.constant 53 : index
    %252 = memref.load %arg0[%c53] : memref<72xf32, #tpu.memory_space<smem>>
    %253 = vector.broadcast %252 : f32 to vector<1x2xf32>
    %254 = arith.mulf %253, %96 : vector<1x2xf32>
    %255 = arith.addf %251, %254 : vector<1x2xf32>
    %c54 = arith.constant 54 : index
    %256 = memref.load %arg0[%c54] : memref<72xf32, #tpu.memory_space<smem>>
    %257 = vector.broadcast %256 : f32 to vector<1x2xf32>
    %258 = arith.mulf %257, %120 : vector<1x2xf32>
    %259 = arith.addf %255, %258 : vector<1x2xf32>
    %c55 = arith.constant 55 : index
    %260 = memref.load %arg0[%c55] : memref<72xf32, #tpu.memory_space<smem>>
    %261 = vector.broadcast %260 : f32 to vector<1x2xf32>
    %262 = arith.mulf %261, %144 : vector<1x2xf32>
    %263 = arith.addf %259, %262 : vector<1x2xf32>
    %c56 = arith.constant 56 : index
    %264 = memref.load %arg0[%c56] : memref<72xf32, #tpu.memory_space<smem>>
    %265 = vector.broadcast %264 : f32 to vector<1x2xf32>
    %266 = arith.mulf %265, %168 : vector<1x2xf32>
    %267 = arith.addf %263, %266 : vector<1x2xf32>
    %c57 = arith.constant 57 : index
    %268 = memref.load %arg0[%c57] : memref<72xf32, #tpu.memory_space<smem>>
    %269 = vector.broadcast %268 : f32 to vector<1x2xf32>
    %270 = arith.mulf %269, %192 : vector<1x2xf32>
    %271 = arith.addf %267, %270 : vector<1x2xf32>
    %c58 = arith.constant 58 : index
    %272 = memref.load %arg0[%c58] : memref<72xf32, #tpu.memory_space<smem>>
    %273 = vector.broadcast %272 : f32 to vector<1x2xf32>
    %274 = arith.mulf %273, %216 : vector<1x2xf32>
    %275 = arith.addf %271, %274 : vector<1x2xf32>
    %c59 = arith.constant 59 : index
    %276 = memref.load %arg0[%c59] : memref<72xf32, #tpu.memory_space<smem>>
    %277 = vector.broadcast %276 : f32 to vector<1x2xf32>
    %278 = arith.mulf %277, %240 : vector<1x2xf32>
    %279 = arith.addf %275, %278 : vector<1x2xf32>
    %c70 = arith.constant 70 : index
    %280 = memref.load %arg0[%c70] : memref<72xf32, #tpu.memory_space<smem>>
    %281 = vector.broadcast %280 : f32 to vector<1x2xf32>
    %282 = arith.addf %279, %281 : vector<1x2xf32>
    %c60 = arith.constant 60 : index
    %283 = memref.load %arg0[%c60] : memref<72xf32, #tpu.memory_space<smem>>
    %284 = vector.broadcast %283 : f32 to vector<1x2xf32>
    %285 = arith.mulf %284, %24 : vector<1x2xf32>
    %c61 = arith.constant 61 : index
    %286 = memref.load %arg0[%c61] : memref<72xf32, #tpu.memory_space<smem>>
    %287 = vector.broadcast %286 : f32 to vector<1x2xf32>
    %288 = arith.mulf %287, %48 : vector<1x2xf32>
    %289 = arith.addf %285, %288 : vector<1x2xf32>
    %c62 = arith.constant 62 : index
    %290 = memref.load %arg0[%c62] : memref<72xf32, #tpu.memory_space<smem>>
    %291 = vector.broadcast %290 : f32 to vector<1x2xf32>
    %292 = arith.mulf %291, %72 : vector<1x2xf32>
    %293 = arith.addf %289, %292 : vector<1x2xf32>
    %c63 = arith.constant 63 : index
    %294 = memref.load %arg0[%c63] : memref<72xf32, #tpu.memory_space<smem>>
    %295 = vector.broadcast %294 : f32 to vector<1x2xf32>
    %296 = arith.mulf %295, %96 : vector<1x2xf32>
    %297 = arith.addf %293, %296 : vector<1x2xf32>
    %c64 = arith.constant 64 : index
    %298 = memref.load %arg0[%c64] : memref<72xf32, #tpu.memory_space<smem>>
    %299 = vector.broadcast %298 : f32 to vector<1x2xf32>
    %300 = arith.mulf %299, %120 : vector<1x2xf32>
    %301 = arith.addf %297, %300 : vector<1x2xf32>
    %c65 = arith.constant 65 : index
    %302 = memref.load %arg0[%c65] : memref<72xf32, #tpu.memory_space<smem>>
    %303 = vector.broadcast %302 : f32 to vector<1x2xf32>
    %304 = arith.mulf %303, %144 : vector<1x2xf32>
    %305 = arith.addf %301, %304 : vector<1x2xf32>
    %c66 = arith.constant 66 : index
    %306 = memref.load %arg0[%c66] : memref<72xf32, #tpu.memory_space<smem>>
    %307 = vector.broadcast %306 : f32 to vector<1x2xf32>
    %308 = arith.mulf %307, %168 : vector<1x2xf32>
    %309 = arith.addf %305, %308 : vector<1x2xf32>
    %c67 = arith.constant 67 : index
    %310 = memref.load %arg0[%c67] : memref<72xf32, #tpu.memory_space<smem>>
    %311 = vector.broadcast %310 : f32 to vector<1x2xf32>
    %312 = arith.mulf %311, %192 : vector<1x2xf32>
    %313 = arith.addf %309, %312 : vector<1x2xf32>
    %c68 = arith.constant 68 : index
    %314 = memref.load %arg0[%c68] : memref<72xf32, #tpu.memory_space<smem>>
    %315 = vector.broadcast %314 : f32 to vector<1x2xf32>
    %316 = arith.mulf %315, %216 : vector<1x2xf32>
    %317 = arith.addf %313, %316 : vector<1x2xf32>
    %c69 = arith.constant 69 : index
    %318 = memref.load %arg0[%c69] : memref<72xf32, #tpu.memory_space<smem>>
    %319 = vector.broadcast %318 : f32 to vector<1x2xf32>
    %320 = arith.mulf %319, %240 : vector<1x2xf32>
    %321 = arith.addf %317, %320 : vector<1x2xf32>
    %c71 = arith.constant 71 : index
    %322 = memref.load %arg0[%c71] : memref<72xf32, #tpu.memory_space<smem>>
    %323 = vector.broadcast %322 : f32 to vector<1x2xf32>
    %324 = arith.addf %321, %323 : vector<1x2xf32>
    %325 = tpu.concatenate %282, %324 in 0 : vector<1x2xf32>, vector<1x2xf32> -> vector<2x2xf32>
    %c0_11 = arith.constant 0 : index
    %c0_12 = arith.constant 0 : index
    %326 = vector.load %arg2[%c0_11, %c0_12] : memref<2x2xf32, #tpu.memory_space<vmem>>, vector<2x2xf32>
    tpu.vector_store %arg2[%c0_11, %c0_12], %325 {strides = array<i32>} : memref<2x2xf32, #tpu.memory_space<vmem>>, vector<2x2xf32>,
    return
  }
}

</mosaic_0001>

<llo_original>
// kernel: tpu_custom_call.1
$region0: #{tpu_custom_call.1}
  #allocation0 [shape = 'u32[]', space=smem, size = 0x4, offset = 0x4, fixed_abs, tag = 'smem constant byte address 0x4 - core index']
  #allocation1 [shape = 'u32[144,128]{1,0:T(1,128)}', space=vmem, size = 0x12000, scoped, tag = 'internal scratch']
  %s0 = inlined_call_operand.vmem [shape: f32[72], index: 0, kind: input, shape index: {}]
  %s1 = inlined_call_operand.vmem [shape: f32[4,2], index: 1, kind: input, shape index: {}]
  %s2 = inlined_call_operand.hbm [shape: f32[2,2], index: 2, kind: output, shape index: {}]
  %s3 = sld [smem:[#allocation0]]
  $region22: #{tpu_custom_call.1} parent=0
    _
  %s5 = ssub.s32 1, %s3
  %s6 = scalar_select 0, %s5, %s3
  $region1: #{tpu_custom_call.1} parent=0
    #allocation2 [shape = 'u8[512]{0}', space=smem, size = 0x200, scoped, tag = 'input window, operand 0, single buffered']
    #allocation3 [shape = 's32[1]{0}', space=sflag, size = 0x4, scoped, tag = 'scoped memory for tpu_custom_call.1']
    #allocation4 [shape = 's32[1]{0}', space=sflag, size = 0x4, scoped, tag = 'scoped memory for tpu_custom_call.1']
    #allocation5 [shape = 'u8[1024]{0}', space=vmem, size = 0x400, scoped, tag = 'output window, operand 0, single buffered']
    %7 = vsyncpa [#allocation4], 0
    %8 = vsyncpa [#allocation3], 0
    // Predicated region
    $region2: #{tpu_custom_call.1} parent=1 // pred_check
      _
    $region3: #{tpu_custom_call.1} parent=1 // pred_check_branch
      %10 = sbr.rel (0) target = $region5
    $region4: #{tpu_custom_call.1} parent=1 // pred_region
      %s12 = ssub.s32 16, 16
      %13 = vsyncadd [#allocation4], %s12
      %s15 = sshll.u32 %s0, 4
      %s16 = int_to_ptr.vmem [resolvable:$true] %s15
      %18 = dma.vmem_to_smem %s16, 16, [#allocation2], [#allocation4]
    $region5: #{tpu_custom_call.1} parent=1 // pred_fallthru
      _
    // Predicated region
    $region6: #{tpu_custom_call.1} parent=1 // pred_check
      _
    $region7: #{tpu_custom_call.1} parent=1 // pred_check_branch
      %20 = sbr.rel (0) target = $region9
    $region8: #{tpu_custom_call.1} parent=1 // pred_region
      _
    $region9: #{tpu_custom_call.1} parent=1 // pred_fallthru
      _
    // Predicated region
    $region10: #{tpu_custom_call.1} parent=1 // pred_check
      _
    $region11: #{tpu_custom_call.1} parent=1 // pred_check_branch
      %22 = sbr.rel (0) target = $region13
    $region12: #{tpu_custom_call.1} parent=1 // pred_region
      %23 = dma.done [#allocation4], 16
    $region13: #{tpu_custom_call.1} parent=1 // pred_fallthru
      _
    %24 = sfence
    %v25 = vld [vmem:[%s1] sm:$0xf]
    %s26 = sld [smem:[#allocation2]]
    %v27 = vstv %s26
    %v28 = vmul.f32 %v27, %v25
    %s29 = sld [smem:[#allocation2 + $0x1]]
    %v30 = vstv %s29
    %v31 = vmul.f32 %v30, %v25
    %v33 = vrot.slane %v31, 1
    %v35 = vadd.f32 %v28, %v33
    %s36 = sld [smem:[#allocation2 + $0x2]]
    %v37 = vstv %s36
    %v38 = vmul.f32 %v37, %v25
    %v40 = vrot.slane %v38, 2
    %v42 = vadd.f32 %v35, %v40
    %s43 = sld [smem:[#allocation2 + $0x3]]
    %v44 = vstv %s43
    %v45 = vmul.f32 %v44, %v25
    %v47 = vrot.slane %v45, 3
    %v49 = vadd.f32 %v42, %v47
    %s50 = sld [smem:[#allocation2 + $0x28]]
    %v51 = vstv %s50
    %v52 = vadd.f32 %v49, %v51
    %v53 = vmax.f32 %v52, 0.0
    %s54 = sld [smem:[#allocation2 + $0x4]]
    %v55 = vstv %s54
    %v56 = vmul.f32 %v55, %v25
    %s57 = sld [smem:[#allocation2 + $0x5]]
    %v58 = vstv %s57
    %v59 = vmul.f32 %v58, %v25
    %v61 = vrot.slane %v59, 1
    %v63 = vadd.f32 %v56, %v61
    %s64 = sld [smem:[#allocation2 + $0x6]]
    %v65 = vstv %s64
    %v66 = vmul.f32 %v65, %v25
    %v68 = vrot.slane %v66, 2
    %v70 = vadd.f32 %v63, %v68
    %s71 = sld [smem:[#allocation2 + $0x7]]
    %v72 = vstv %s71
    %v73 = vmul.f32 %v72, %v25
    %v75 = vrot.slane %v73, 3
    %v77 = vadd.f32 %v70, %v75
    %s78 = sld [smem:[#allocation2 + $0x29]]
    %v79 = vstv %s78
    %v80 = vadd.f32 %v77, %v79
    %v81 = vmax.f32 %v80, 0.0
    %s82 = sld [smem:[#allocation2 + $0x8]]
    %v83 = vstv %s82
    %v84 = vmul.f32 %v83, %v25
    %s85 = sld [smem:[#allocation2 + $0x9]]
    %v86 = vstv %s85
    %v87 = vmul.f32 %v86, %v25
    %v89 = vrot.slane %v87, 1
    %v91 = vadd.f32 %v84, %v89
    %s92 = sld [smem:[#allocation2 + $0xa]]
    %v93 = vstv %s92
    %v94 = vmul.f32 %v93, %v25
    %v96 = vrot.slane %v94, 2
    %v98 = vadd.f32 %v91, %v96
    %s99 = sld [smem:[#allocation2 + $0xb]]
    %v100 = vstv %s99
    %v101 = vmul.f32 %v100, %v25
    %v103 = vrot.slane %v101, 3
    %v105 = vadd.f32 %v98, %v103
    %s106 = sld [smem:[#allocation2 + $0x2a]]
    %v107 = vstv %s106
    %v108 = vadd.f32 %v105, %v107
    %v109 = vmax.f32 %v108, 0.0
    %s110 = sld [smem:[#allocation2 + $0xc]]
    %v111 = vstv %s110
    %v112 = vmul.f32 %v111, %v25
    %s113 = sld [smem:[#allocation2 + $0xd]]
    %v114 = vstv %s113
    %v115 = vmul.f32 %v114, %v25
    %v117 = vrot.slane %v115, 1
    %v119 = vadd.f32 %v112, %v117
    %s120 = sld [smem:[#allocation2 + $0xe]]
    %v121 = vstv %s120
    %v122 = vmul.f32 %v121, %v25
    %v124 = vrot.slane %v122, 2
    %v126 = vadd.f32 %v119, %v124
    %s127 = sld [smem:[#allocation2 + $0xf]]
    %v128 = vstv %s127
    %v129 = vmul.f32 %v128, %v25
    %v131 = vrot.slane %v129, 3
    %v133 = vadd.f32 %v126, %v131
    %s134 = sld [smem:[#allocation2 + $0x2b]]
    %v135 = vstv %s134
    %v136 = vadd.f32 %v133, %v135
    %v137 = vmax.f32 %v136, 0.0
    %s138 = sld [smem:[#allocation2 + $0x10]]
    %v139 = vstv %s138
    %v140 = vmul.f32 %v139, %v25
    %s141 = sld [smem:[#allocation2 + $0x11]]
    %v142 = vstv %s141
    %v143 = vmul.f32 %v142, %v25
    %v145 = vrot.slane %v143, 1
    %v147 = vadd.f32 %v140, %v145
    %s148 = sld [smem:[#allocation2 + $0x12]]
    %v149 = vstv %s148
    %v150 = vmul.f32 %v149, %v25
    %v152 = vrot.slane %v150, 2
    %v154 = vadd.f32 %v147, %v152
    %s155 = sld [smem:[#allocation2 + $0x13]]
    %v156 = vstv %s155
    %v157 = vmul.f32 %v156, %v25
    %v159 = vrot.slane %v157, 3
    %v161 = vadd.f32 %v154, %v159
    %s162 = sld [smem:[#allocation2 + $0x2c]]
    %v163 = vstv %s162
    %v164 = vadd.f32 %v161, %v163
    %v165 = vmax.f32 %v164, 0.0
    %s166 = sld [smem:[#allocation2 + $0x14]]
    %v167 = vstv %s166
    %v168 = vmul.f32 %v167, %v25
    %s169 = sld [smem:[#allocation2 + $0x15]]
    %v170 = vstv %s169
    %v171 = vmul.f32 %v170, %v25
    %v173 = vrot.slane %v171, 1
    %v175 = vadd.f32 %v168, %v173
    %s176 = sld [smem:[#allocation2 + $0x16]]
    %v177 = vstv %s176
    %v178 = vmul.f32 %v177, %v25
    %v180 = vrot.slane %v178, 2
    %v182 = vadd.f32 %v175, %v180
    %s183 = sld [smem:[#allocation2 + $0x17]]
    %v184 = vstv %s183
    %v185 = vmul.f32 %v184, %v25
    %v187 = vrot.slane %v185, 3
    %v189 = vadd.f32 %v182, %v187
    %s190 = sld [smem:[#allocation2 + $0x2d]]
    %v191 = vstv %s190
    %v192 = vadd.f32 %v189, %v191
    %v193 = vmax.f32 %v192, 0.0
    %s194 = sld [smem:[#allocation2 + $0x18]]
    %v195 = vstv %s194
    %v196 = vmul.f32 %v195, %v25
    %s197 = sld [smem:[#allocation2 + $0x19]]
    %v198 = vstv %s197
    %v199 = vmul.f32 %v198, %v25
    %v201 = vrot.slane %v199, 1
    %v203 = vadd.f32 %v196, %v201
    %s204 = sld [smem:[#allocation2 + $0x1a]]
    %v205 = vstv %s204
    %v206 = vmul.f32 %v205, %v25
    %v208 = vrot.slane %v206, 2
    %v210 = vadd.f32 %v203, %v208
    %s211 = sld [smem:[#allocation2 + $0x1b]]
    %v212 = vstv %s211
    %v213 = vmul.f32 %v212, %v25
    %v215 = vrot.slane %v213, 3
    %v217 = vadd.f32 %v210, %v215
    %s218 = sld [smem:[#allocation2 + $0x2e]]
    %v219 = vstv %s218
    %v220 = vadd.f32 %v217, %v219
    %v221 = vmax.f32 %v220, 0.0
    %s222 = sld [smem:[#allocation2 + $0x1c]]
    %v223 = vstv %s222
    %v224 = vmul.f32 %v223, %v25
    %s225 = sld [smem:[#allocation2 + $0x1d]]
    %v226 = vstv %s225
    %v227 = vmul.f32 %v226, %v25
    %v229 = vrot.slane %v227, 1
    %v231 = vadd.f32 %v224, %v229
    %s232 = sld [smem:[#allocation2 + $0x1e]]
    %v233 = vstv %s232
    %v234 = vmul.f32 %v233, %v25
    %v236 = vrot.slane %v234, 2
    %v238 = vadd.f32 %v231, %v236
    %s239 = sld [smem:[#allocation2 + $0x1f]]
    %v240 = vstv %s239
    %v241 = vmul.f32 %v240, %v25
    %v243 = vrot.slane %v241, 3
    %v245 = vadd.f32 %v238, %v243
    %s246 = sld [smem:[#allocation2 + $0x2f]]
    %v247 = vstv %s246
    %v248 = vadd.f32 %v245, %v247
    %v249 = vmax.f32 %v248, 0.0
    %s250 = sld [smem:[#allocation2 + $0x20]]
    %v251 = vstv %s250
    %v252 = vmul.f32 %v251, %v25
    %s253 = sld [smem:[#allocation2 + $0x21]]
    %v254 = vstv %s253
    %v255 = vmul.f32 %v254, %v25
    %v257 = vrot.slane %v255, 1
    %v259 = vadd.f32 %v252, %v257
    %s260 = sld [smem:[#allocation2 + $0x22]]
    %v261 = vstv %s260
    %v262 = vmul.f32 %v261, %v25
    %v264 = vrot.slane %v262, 2
    %v266 = vadd.f32 %v259, %v264
    %s267 = sld [smem:[#allocation2 + $0x23]]
    %v268 = vstv %s267
    %v269 = vmul.f32 %v268, %v25
    %v271 = vrot.slane %v269, 3
    %v273 = vadd.f32 %v266, %v271
    %s274 = sld [smem:[#allocation2 + $0x30]]
    %v275 = vstv %s274
    %v276 = vadd.f32 %v273, %v275
    %v277 = vmax.f32 %v276, 0.0
    %s278 = sld [smem:[#allocation2 + $0x24]]
    %v279 = vstv %s278
    %v280 = vmul.f32 %v279, %v25
    %s281 = sld [smem:[#allocation2 + $0x25]]
    %v282 = vstv %s281
    %v283 = vmul.f32 %v282, %v25
    %v285 = vrot.slane %v283, 1
    %v287 = vadd.f32 %v280, %v285
    %s288 = sld [smem:[#allocation2 + $0x26]]
    %v289 = vstv %s288
    %v290 = vmul.f32 %v289, %v25
    %v292 = vrot.slane %v290, 2
    %v294 = vadd.f32 %v287, %v292
    %s295 = sld [smem:[#allocation2 + $0x27]]
    %v296 = vstv %s295
    %v297 = vmul.f32 %v296, %v25
    %v299 = vrot.slane %v297, 3
    %v301 = vadd.f32 %v294, %v299
    %s302 = sld [smem:[#allocation2 + $0x31]]
    %v303 = vstv %s302
    %v304 = vadd.f32 %v301, %v303
    %v305 = vmax.f32 %v304, 0.0
    %s306 = sld [smem:[#allocation2 + $0x32]]
    %v307 = vstv %s306
    %v308 = vmul.f32 %v307, %v53
    %s309 = sld [smem:[#allocation2 + $0x33]]
    %v310 = vstv %s309
    %v311 = vmul.f32 %v310, %v81
    %v312 = vadd.f32 %v308, %v311
    %s313 = sld [smem:[#allocation2 + $0x34]]
    %v314 = vstv %s313
    %v315 = vmul.f32 %v314, %v109
    %v316 = vadd.f32 %v312, %v315
    %s317 = sld [smem:[#allocation2 + $0x35]]
    %v318 = vstv %s317
    %v319 = vmul.f32 %v318, %v137
    %v320 = vadd.f32 %v316, %v319
    %s321 = sld [smem:[#allocation2 + $0x36]]
    %v322 = vstv %s321
    %v323 = vmul.f32 %v322, %v165
    %v324 = vadd.f32 %v320, %v323
    %s325 = sld [smem:[#allocation2 + $0x37]]
    %v326 = vstv %s325
    %v327 = vmul.f32 %v326, %v193
    %v328 = vadd.f32 %v324, %v327
    %s329 = sld [smem:[#allocation2 + $0x38]]
    %v330 = vstv %s329
    %v331 = vmul.f32 %v330, %v221
    %v332 = vadd.f32 %v328, %v331
    %s333 = sld [smem:[#allocation2 + $0x39]]
    %v334 = vstv %s333
    %v335 = vmul.f32 %v334, %v249
    %v336 = vadd.f32 %v332, %v335
    %s337 = sld [smem:[#allocation2 + $0x3a]]
    %v338 = vstv %s337
    %v339 = vmul.f32 %v338, %v277
    %v340 = vadd.f32 %v336, %v339
    %s341 = sld [smem:[#allocation2 + $0x3b]]
    %v342 = vstv %s341
    %v343 = vmul.f32 %v342, %v305
    %v344 = vadd.f32 %v340, %v343
    %s345 = sld [smem:[#allocation2 + $0x46]]
    %v346 = vstv %s345
    %v347 = vadd.f32 %v344, %v346
    %s348 = sld [smem:[#allocation2 + $0x3c]]
    %v349 = vstv %s348
    %v350 = vmul.f32 %v349, %v53
    %s351 = sld [smem:[#allocation2 + $0x3d]]
    %v352 = vstv %s351
    %v353 = vmul.f32 %v352, %v81
    %v354 = vadd.f32 %v350, %v353
    %s355 = sld [smem:[#allocation2 + $0x3e]]
    %v356 = vstv %s355
    %v357 = vmul.f32 %v356, %v109
    %v358 = vadd.f32 %v354, %v357
    %s359 = sld [smem:[#allocation2 + $0x3f]]
    %v360 = vstv %s359
    %v361 = vmul.f32 %v360, %v137
    %v362 = vadd.f32 %v358, %v361
    %s363 = sld [smem:[#allocation2 + $0x40]]
    %v364 = vstv %s363
    %v365 = vmul.f32 %v364, %v165
    %v366 = vadd.f32 %v362, %v365
    %s367 = sld [smem:[#allocation2 + $0x41]]
    %v368 = vstv %s367
    %v369 = vmul.f32 %v368, %v193
    %v370 = vadd.f32 %v366, %v369
    %s371 = sld [smem:[#allocation2 + $0x42]]
    %v372 = vstv %s371
    %v373 = vmul.f32 %v372, %v221
    %v374 = vadd.f32 %v370, %v373
    %s375 = sld [smem:[#allocation2 + $0x43]]
    %v376 = vstv %s375
    %v377 = vmul.f32 %v376, %v249
    %v378 = vadd.f32 %v374, %v377
    %s379 = sld [smem:[#allocation2 + $0x44]]
    %v380 = vstv %s379
    %v381 = vmul.f32 %v380, %v277
    %v382 = vadd.f32 %v378, %v381
    %s383 = sld [smem:[#allocation2 + $0x45]]
    %v384 = vstv %s383
    %v385 = vmul.f32 %v384, %v305
    %v386 = vadd.f32 %v382, %v385
    %s387 = sld [smem:[#allocation2 + $0x47]]
    %v388 = vstv %s387
    %v389 = vadd.f32 %v386, %v388
    %v391 = vrot.slane %v389, 7
    %vm393 = vcmask 1040384
    %v394 = vsel %vm393, %v347, %v391
    %vm395 = vcmask 9216
    %396 = vst.msk [vmem:[#allocation5] sm:$0x3] %vm395, %v394
    // Predicated region
    $region14: #{tpu_custom_call.1} parent=1 // pred_check
      _
    $region15: #{tpu_custom_call.1} parent=1 // pred_check_branch
      %398 = sbr.rel (0) target = $region17
    $region16: #{tpu_custom_call.1} parent=1 // pred_region
      %s400 = ssub.s32 32, 32
      %401 = vsyncadd [#allocation3], %s400
      %s403 = sshll.u32 [#allocation5], 4
      %s404 = int_to_ptr.vmem [resolvable:$true] %s403
      %406 = dma.vmem_to_hbm [thread:$0]  %s404, 32, %s2, [#allocation3]
    $region17: #{tpu_custom_call.1} parent=1 // pred_fallthru
      _
    // Predicated region
    $region18: #{tpu_custom_call.1} parent=1 // pred_check
      _
    $region19: #{tpu_custom_call.1} parent=1 // pred_check_branch
      %408 = sbr.rel (0) target = $region21
    $region20: #{tpu_custom_call.1} parent=1 // pred_region
      %409 = dma.done [#allocation3], 32
    $region21: #{tpu_custom_call.1} parent=1 // pred_fallthru
      _
    %410 = vsyncpa [#allocation3], 1
    %411 = vsyncpa [#allocation4], 1

</llo_original>
